<compile_context>
chip_gen: v7x
topology: tpu7x:2x2x1
jax: 0.10.0
libtpu: 0.0.40
codegen_flags: <defaults>
</compile_context>

<pallas_src>
import functools

import jax
import jax.numpy as jnp
from jax.experimental import pallas as pl
from jax.experimental.pallas import tpu as pltpu

IN_DIM = 13   # true input feature count
PAD_DIM = 8   # all hidden / output widths zero-padded to one sublane tile


def mlp_kernel(x_ref,
               w1_ref, b1_ref,
               w2_ref, b2_ref,
               w3_ref, b3_ref,
               w4_ref, b4_ref,
               o_ref):
    """Fused 4-layer MLP on one batch tile (batch on the lane axis).

      x_ref : [13, TILE_B]  f32 or bf16  (true features, unpadded)
      wN    : [8, K] f32, bN : [8, 1] f32   (zero-padded to 8 output rows)
      o_ref : [1, TILE_B]  f32   (lane-dense output row)
    """
    h = x_ref[...].astype(jnp.float32)                   # [13, TILE_B]
    for w_ref, b_ref in ((w1_ref, b1_ref), (w2_ref, b2_ref),
                         (w3_ref, b3_ref), (w4_ref, b4_ref)):
        z = jnp.dot(w_ref[...], h,
                    preferred_element_type=jnp.float32) + b_ref[...]
        # sigmoid(z) = 0.5*tanh(0.5*z) + 0.5 : a single EUP push per element.
        h = 0.5 * jnp.tanh(0.5 * z) + 0.5                # [8, TILE_B]
    o_ref[...] = h[0:1, :].astype(o_ref.dtype)           # real output is row 0


def _prepare_params(params):
    """PyTorch layout (w [out,in], b [out]) -> kernel layout, zero-padded to 8 rows.

    Padded weight columns are zero, so the sigmoid(0)=0.5 values in padded rows
    of the previous layer never contribute -> exact PyTorch semantics.
    """
    prepared = []
    prev_width = IN_DIM
    for (w, b) in params:
        out_dim, in_dim = w.shape
        wp = jnp.zeros((PAD_DIM, prev_width), jnp.float32)
        wp = wp.at[:out_dim, :in_dim].set(w.astype(jnp.float32))
        bp = jnp.zeros((PAD_DIM, 1), jnp.float32)
        bp = bp.at[:out_dim, 0].set(b.astype(jnp.float32))
        prepared.append((wp, bp))
        prev_width = PAD_DIM
    return prepared


def _pick_tile(batch, tile_b):
    # Big tiles (amortize ~0.35 us/step pipeline overhead), but keep >= 2
    # balanced tiles when the batch allows it so both v7x TensorCores get work.
    half = pl.cdiv(pl.cdiv(batch, 2), 128) * 128
    return max(128, min(tile_b, half))


def _mlp_pallas(xt, params, tile_b):
    """xt: [13, batch] in the streaming dtype -> [batch] f32 sigmoid output."""
    batch = xt.shape[1]
    tile = _pick_tile(batch, tile_b)

    (w1, b1), (w2, b2), (w3, b3), (w4, b4) = _prepare_params(params)

    def const_spec(shape):
        # Constant block index -> fetched once, VMEM-resident across all tiles.
        return pl.BlockSpec(shape, lambda i: (0, 0))

    out = pl.pallas_call(
        mlp_kernel,
        grid=(pl.cdiv(batch, tile),),       # partial final block handled by masking
        in_specs=[
            pl.BlockSpec((IN_DIM, tile), lambda i: (0, i)),   # pipelined x tile
            const_spec(w1.shape), const_spec(b1.shape),
            const_spec(w2.shape), const_spec(b2.shape),
            const_spec(w3.shape), const_spec(b3.shape),
            const_spec(w4.shape), const_spec(b4.shape),
        ],
        out_specs=pl.BlockSpec((1, tile), lambda i: (0, i)),  # lane-dense output
        out_shape=jax.ShapeDtypeStruct((1, batch), jnp.float32),
        compiler_params=pltpu.CompilerParams(
            dimension_semantics=("parallel",),   # shard batch tiles across TCs (v7x)
            vmem_limit_bytes=48 * 1024 * 1024,   # headroom under v7x's 64 MiB VMEM
        ),
    )(xt, w1, b1, w2, b2, w3, b3, w4, b4)

    return out[0]                                          # squeezed [batch]


@functools.partial(jax.jit, static_argnames=("tile_b", "stream_bf16"))
def mlp_forward_feature_major(xt, params, *, tile_b=32768, stream_bf16=False):
    """Preferred interface: xt is feature-major [13, batch] (no transpose pass)."""
    dt = jnp.bfloat16 if stream_bf16 else jnp.float32
    return _mlp_pallas(xt.astype(dt), params, tile_b)


@functools.partial(jax.jit, static_argnames=("tile_b", "stream_bf16"))
def mlp_forward(x, params, *, tile_b=32768, stream_bf16=False):
    """x: [batch, 13] (torch layout). Returns sigmoid MLP output, shape [batch]."""
    dt = jnp.bfloat16 if stream_bf16 else jnp.float32
    xt = x.T.astype(dt)     # single fused cast+transpose XLA op; no pad copy
    return _mlp_pallas(xt, params, tile_b)


def init_linear_params(key, fan_in, fan_out):
    # PyTorch nn.Linear default init: U(-1/sqrt(fan_in), 1/sqrt(fan_in)) for W and b.
    kw, kb = jax.random.split(key)
    bound = 1.0 / float(fan_in) ** 0.5
    w = jax.random.uniform(kw, (fan_out, fan_in), jnp.float32, -bound, bound)  # [out, in]
    b = jax.random.uniform(kb, (fan_out,), jnp.float32, -bound, bound)
    return w, b


if __name__ == "__main__":
    key = jax.random.PRNGKey(0)
    k_x, k_x2, k1, k2, k3, k4 = jax.random.split(key, 6)

    params = [
        init_linear_params(k1, 13, 8),
        init_linear_params(k2, 8, 4),
        init_linear_params(k3, 4, 2),
        init_linear_params(k4, 2, 1),
    ]

    # Pure-JAX reference with torch.nn.Linear semantics: y = sigmoid(x @ W.T + b).
    def reference(x):
        y = x
        for w, b in params:
            y = jax.nn.sigmoid(y @ w.T + b)
        return y[:, 0]

    # Small ragged batch (single partial 128-lane block).
    batch = 8
    x = jax.random.normal(k_x, (batch, IN_DIM), dtype=jnp.float32)
    out = mlp_forward(x, params)
    jax.block_until_ready(out)
    assert out.shape == (batch,), out.shape
    assert jnp.allclose(out, reference(x), atol=1e-4), "mismatch vs JAX reference"

    # Ragged multi-tile batch: 2 balanced tiles + partial final block.
    batch2 = 300
    x2 = jax.random.normal(k_x2, (batch2, IN_DIM), dtype=jnp.float32)
    out2 = mlp_forward(x2, params)
    jax.block_until_ready(out2)
    assert jnp.allclose(out2, reference(x2), atol=1e-4), "mismatch (multi-tile)"

    # bf16-streamed input path (bandwidth option for v5e/v6e) -- looser tolerance.
    out3 = mlp_forward(x2, params, stream_bf16=True)
    jax.block_until_ready(out3)
    assert jnp.allclose(out3, reference(x2), atol=5e-2), "mismatch (bf16 stream)"

    print("KERNEL_OK")
</pallas_src>

<mosaic_0001>
module attributes {stable_mosaic.version = 11 : i64} {
  func.func @mlp_kernel(%arg0: i32, %arg1: memref<13x128xf32, #tpu.memory_space<vmem>>, %arg2: memref<8x13xf32, #tpu.memory_space<vmem>>, %arg3: memref<8x1xf32, #tpu.memory_space<vmem>>, %arg4: memref<8x8xf32, #tpu.memory_space<vmem>>, %arg5: memref<8x1xf32, #tpu.memory_space<vmem>>, %arg6: memref<8x8xf32, #tpu.memory_space<vmem>>, %arg7: memref<8x1xf32, #tpu.memory_space<vmem>>, %arg8: memref<8x8xf32, #tpu.memory_space<vmem>>, %arg9: memref<8x1xf32, #tpu.memory_space<vmem>>, %arg10: memref<1x128xf32, #tpu.memory_space<vmem>>) attributes {dimension_semantics = [#tpu.dimension_semantics<parallel>], iteration_bounds = array<i64: 1>, scalar_prefetch = 0 : i64, scratch_operands = 0 : i64, tpu.core_type = #tpu.core_type<tc>, window_params = [{transform_indices = @transform_0, window_bounds = array<i64: 13, 128>}, {pipeline_mode = #tpu.pipeline_mode<synchronous>, transform_indices = @transform_1, window_bounds = array<i64: 8, 13>}, {pipeline_mode = #tpu.pipeline_mode<synchronous>, transform_indices = @transform_2, window_bounds = array<i64: 8, 1>}, {pipeline_mode = #tpu.pipeline_mode<synchronous>, transform_indices = @transform_3, window_bounds = array<i64: 8, 8>}, {pipeline_mode = #tpu.pipeline_mode<synchronous>, transform_indices = @transform_4, window_bounds = array<i64: 8, 1>}, {pipeline_mode = #tpu.pipeline_mode<synchronous>, transform_indices = @transform_5, window_bounds = array<i64: 8, 8>}, {pipeline_mode = #tpu.pipeline_mode<synchronous>, transform_indices = @transform_6, window_bounds = array<i64: 8, 1>}, {pipeline_mode = #tpu.pipeline_mode<synchronous>, transform_indices = @transform_7, window_bounds = array<i64: 8, 8>}, {pipeline_mode = #tpu.pipeline_mode<synchronous>, transform_indices = @transform_8, window_bounds = array<i64: 8, 1>}, {transform_indices = @transform_9, window_bounds = array<i64: 1, 128>}]} {
    %c0 = arith.constant 0 : index
    %c0_0 = arith.constant 0 : index
    %0 = vector.load %arg1[%c0, %c0_0] : memref<13x128xf32, #tpu.memory_space<vmem>>, vector<13x128xf32>
    %c0_1 = arith.constant 0 : index
    %c0_2 = arith.constant 0 : index
    %1 = vector.load %arg2[%c0_1, %c0_2] : memref<8x13xf32, #tpu.memory_space<vmem>>, vector<8x13xf32>
    %cst = arith.constant dense<0.000000e+00> : vector<8x128xf32>
    %2 = tpu.matmul %1, %0, %cst {dimension_numbers = #tpu.dot_dimension_numbers<[1], [0], [0], [1], [0, 0, 1, 1], [], []>} : vector<8x13xf32>, vector<13x128xf32>, vector<8x128xf32> -> vector<8x128xf32>
    %c0_3 = arith.constant 0 : index
    %c0_4 = arith.constant 0 : index
    %3 = vector.load %arg3[%c0_3, %c0_4] : memref<8x1xf32, #tpu.memory_space<vmem>>, vector<8x1xf32>
    %4 = vector.broadcast %3 : vector<8x1xf32> to vector<8x128xf32>
    %5 = arith.addf %2, %4 : vector<8x128xf32>
    %cst_5 = arith.constant 5.000000e-01 : f32
    %6 = vector.broadcast %cst_5 : f32 to vector<8x128xf32>
    %7 = arith.mulf %6, %5 : vector<8x128xf32>
    %8 = math.tanh %7 : vector<8x128xf32>
    %cst_6 = arith.constant 5.000000e-01 : f32
    %9 = vector.broadcast %cst_6 : f32 to vector<8x128xf32>
    %10 = arith.mulf %9, %8 : vector<8x128xf32>
    %cst_7 = arith.constant 5.000000e-01 : f32
    %11 = vector.broadcast %cst_7 : f32 to vector<8x128xf32>
    %12 = arith.addf %10, %11 : vector<8x128xf32>
    %c0_8 = arith.constant 0 : index
    %c0_9 = arith.constant 0 : index
    %13 = vector.load %arg4[%c0_8, %c0_9] : memref<8x8xf32, #tpu.memory_space<vmem>>, vector<8x8xf32>
    %cst_10 = arith.constant dense<0.000000e+00> : vector<8x128xf32>
    %14 = tpu.matmul %13, %12, %cst_10 {dimension_numbers = #tpu.dot_dimension_numbers<[1], [0], [0], [1], [0, 0, 1, 1], [], []>} : vector<8x8xf32>, vector<8x128xf32>, vector<8x128xf32> -> vector<8x128xf32>
    %c0_11 = arith.constant 0 : index
    %c0_12 = arith.constant 0 : index
    %15 = vector.load %arg5[%c0_11, %c0_12] : memref<8x1xf32, #tpu.memory_space<vmem>>, vector<8x1xf32>
    %16 = vector.broadcast %15 : vector<8x1xf32> to vector<8x128xf32>
    %17 = arith.addf %14, %16 : vector<8x128xf32>
    %cst_13 = arith.constant 5.000000e-01 : f32
    %18 = vector.broadcast %cst_13 : f32 to vector<8x128xf32>
    %19 = arith.mulf %18, %17 : vector<8x128xf32>
    %20 = math.tanh %19 : vector<8x128xf32>
    %cst_14 = arith.constant 5.000000e-01 : f32
    %21 = vector.broadcast %cst_14 : f32 to vector<8x128xf32>
    %22 = arith.mulf %21, %20 : vector<8x128xf32>
    %cst_15 = arith.constant 5.000000e-01 : f32
    %23 = vector.broadcast %cst_15 : f32 to vector<8x128xf32>
    %24 = arith.addf %22, %23 : vector<8x128xf32>
    %c0_16 = arith.constant 0 : index
    %c0_17 = arith.constant 0 : index
    %25 = vector.load %arg6[%c0_16, %c0_17] : memref<8x8xf32, #tpu.memory_space<vmem>>, vector<8x8xf32>
    %cst_18 = arith.constant dense<0.000000e+00> : vector<8x128xf32>
    %26 = tpu.matmul %25, %24, %cst_18 {dimension_numbers = #tpu.dot_dimension_numbers<[1], [0], [0], [1], [0, 0, 1, 1], [], []>} : vector<8x8xf32>, vector<8x128xf32>, vector<8x128xf32> -> vector<8x128xf32>
    %c0_19 = arith.constant 0 : index
    %c0_20 = arith.constant 0 : index
    %27 = vector.load %arg7[%c0_19, %c0_20] : memref<8x1xf32, #tpu.memory_space<vmem>>, vector<8x1xf32>
    %28 = vector.broadcast %27 : vector<8x1xf32> to vector<8x128xf32>
    %29 = arith.addf %26, %28 : vector<8x128xf32>
    %cst_21 = arith.constant 5.000000e-01 : f32
    %30 = vector.broadcast %cst_21 : f32 to vector<8x128xf32>
    %31 = arith.mulf %30, %29 : vector<8x128xf32>
    %32 = math.tanh %31 : vector<8x128xf32>
    %cst_22 = arith.constant 5.000000e-01 : f32
    %33 = vector.broadcast %cst_22 : f32 to vector<8x128xf32>
    %34 = arith.mulf %33, %32 : vector<8x128xf32>
    %cst_23 = arith.constant 5.000000e-01 : f32
    %35 = vector.broadcast %cst_23 : f32 to vector<8x128xf32>
    %36 = arith.addf %34, %35 : vector<8x128xf32>
    %c0_24 = arith.constant 0 : index
    %c0_25 = arith.constant 0 : index
    %37 = vector.load %arg8[%c0_24, %c0_25] : memref<8x8xf32, #tpu.memory_space<vmem>>, vector<8x8xf32>
    %cst_26 = arith.constant dense<0.000000e+00> : vector<8x128xf32>
    %38 = tpu.matmul %37, %36, %cst_26 {dimension_numbers = #tpu.dot_dimension_numbers<[1], [0], [0], [1], [0, 0, 1, 1], [], []>} : vector<8x8xf32>, vector<8x128xf32>, vector<8x128xf32> -> vector<8x128xf32>
    %c0_27 = arith.constant 0 : index
    %c0_28 = arith.constant 0 : index
    %39 = vector.load %arg9[%c0_27, %c0_28] : memref<8x1xf32, #tpu.memory_space<vmem>>, vector<8x1xf32>
    %40 = vector.broadcast %39 : vector<8x1xf32> to vector<8x128xf32>
    %41 = arith.addf %38, %40 : vector<8x128xf32>
    %cst_29 = arith.constant 5.000000e-01 : f32
    %42 = vector.broadcast %cst_29 : f32 to vector<8x128xf32>
    %43 = arith.mulf %42, %41 : vector<8x128xf32>
    %44 = math.tanh %43 : vector<8x128xf32>
    %cst_30 = arith.constant 5.000000e-01 : f32
    %45 = vector.broadcast %cst_30 : f32 to vector<8x128xf32>
    %46 = arith.mulf %45, %44 : vector<8x128xf32>
    %cst_31 = arith.constant 5.000000e-01 : f32
    %47 = vector.broadcast %cst_31 : f32 to vector<8x128xf32>
    %48 = arith.addf %46, %47 : vector<8x128xf32>
    %49 = vector.extract_strided_slice %48 {offsets = [0, 0], sizes = [1, 128], strides = [1, 1]} : vector<8x128xf32> to vector<1x128xf32>
    %c0_32 = arith.constant 0 : index
    %c0_33 = arith.constant 0 : index
    %50 = vector.load %arg10[%c0_32, %c0_33] : memref<1x128xf32, #tpu.memory_space<vmem>>, vector<1x128xf32>
    tpu.vector_store %arg10[%c0_32, %c0_33], %49 {strides = array<i32>} : memref<1x128xf32, #tpu.memory_space<vmem>>, vector<1x128xf32>,
    return
  }
  func.func @transform_0(%arg0: i32) -> (i32, i32) {
    %c0_i32 = arith.constant 0 : i32
    %c0_i32_0 = arith.constant 0 : i32
    return %c0_i32, %arg0 : i32, i32
  }
  func.func @transform_1(%arg0: i32) -> (i32, i32) {
    %c0_i32 = arith.constant 0 : i32
    %c0_i32_0 = arith.constant 0 : i32
    %c0_i32_1 = arith.constant 0 : i32
    return %c0_i32, %c0_i32_0 : i32, i32
  }
  func.func @transform_2(%arg0: i32) -> (i32, i32) {
    %c0_i32 = arith.constant 0 : i32
    %c0_i32_0 = arith.constant 0 : i32
    %c0_i32_1 = arith.constant 0 : i32
    return %c0_i32, %c0_i32_0 : i32, i32
  }
  func.func @transform_3(%arg0: i32) -> (i32, i32) {
    %c0_i32 = arith.constant 0 : i32
    %c0_i32_0 = arith.constant 0 : i32
    %c0_i32_1 = arith.constant 0 : i32
    return %c0_i32, %c0_i32_0 : i32, i32
  }
  func.func @transform_4(%arg0: i32) -> (i32, i32) {
    %c0_i32 = arith.constant 0 : i32
    %c0_i32_0 = arith.constant 0 : i32
    %c0_i32_1 = arith.constant 0 : i32
    return %c0_i32, %c0_i32_0 : i32, i32
  }
  func.func @transform_5(%arg0: i32) -> (i32, i32) {
    %c0_i32 = arith.constant 0 : i32
    %c0_i32_0 = arith.constant 0 : i32
    %c0_i32_1 = arith.constant 0 : i32
    return %c0_i32, %c0_i32_0 : i32, i32
  }
  func.func @transform_6(%arg0: i32) -> (i32, i32) {
    %c0_i32 = arith.constant 0 : i32
    %c0_i32_0 = arith.constant 0 : i32
    %c0_i32_1 = arith.constant 0 : i32
    return %c0_i32, %c0_i32_0 : i32, i32
  }
  func.func @transform_7(%arg0: i32) -> (i32, i32) {
    %c0_i32 = arith.constant 0 : i32
    %c0_i32_0 = arith.constant 0 : i32
    %c0_i32_1 = arith.constant 0 : i32
    return %c0_i32, %c0_i32_0 : i32, i32
  }
  func.func @transform_8(%arg0: i32) -> (i32, i32) {
    %c0_i32 = arith.constant 0 : i32
    %c0_i32_0 = arith.constant 0 : i32
    %c0_i32_1 = arith.constant 0 : i32
    return %c0_i32, %c0_i32_0 : i32, i32
  }
  func.func @transform_9(%arg0: i32) -> (i32, i32) {
    %c0_i32 = arith.constant 0 : i32
    %c0_i32_0 = arith.constant 0 : i32
    return %c0_i32, %arg0 : i32, i32
  }
}

</mosaic_0001>

<llo_original>
// kernel: mlp_forward.1
$region0: #{mlp_forward.1}
  #allocation0 [shape = 'u32[]', space=smem, size = 0x4, offset = 0x4, fixed_abs, tag = 'smem constant byte address 0x4 - core index']
  #allocation1 [shape = 'u32[144,128]{1,0:T(1,128)}', space=vmem, size = 0x12000, scoped, tag = 'internal scratch']
  %s0 = inlined_call_operand.vmem [shape: f32[13,8], index: 0, kind: input, shape index: {}]
  %s1 = inlined_call_operand.vmem [shape: f32[8,13], index: 1, kind: input, shape index: {}]
  %s2 = inlined_call_operand.vmem [shape: f32[8,1], index: 2, kind: input, shape index: {}]
  %s3 = inlined_call_operand.vmem [shape: f32[8,8], index: 3, kind: input, shape index: {}]
  %s4 = inlined_call_operand.vmem [shape: f32[8,1], index: 4, kind: input, shape index: {}]
  %s5 = inlined_call_operand.vmem [shape: f32[8,8], index: 5, kind: input, shape index: {}]
  %s6 = inlined_call_operand.vmem [shape: f32[8,1], index: 6, kind: input, shape index: {}]
  %s7 = inlined_call_operand.vmem [shape: f32[8,8], index: 7, kind: input, shape index: {}]
  %s8 = inlined_call_operand.vmem [shape: f32[8,1], index: 8, kind: input, shape index: {}]
  %s9 = inlined_call_operand.hbm [shape: f32[1,8], index: 9, kind: output, shape index: {}]
  %s10 = sld [smem:[#allocation0]]
  $region46: #{mlp_forward.1} parent=0
    _
  %s12 = ssub.s32 1, %s10
  %s13 = scalar_select 0, %s12, %s10
  $region1: #{mlp_forward.1} parent=0
    #allocation2 [shape = 'u8[512]{0}', space=vmem, size = 0x400, scoped, tag = 'output window, operand 0, single buffered']
    #allocation3 [shape = 's32[1]{0}', space=sflag, size = 0x4, scoped, tag = 'scoped memory for mlp_forward.1']
    %14 = vsyncpa [#allocation3], 0
    // Predicated region
    $region2: #{mlp_forward.1} parent=1 // pred_check
      _
    $region3: #{mlp_forward.1} parent=1 // pred_check_branch
      %16 = sbr.rel (0) target = $region5
    $region4: #{mlp_forward.1} parent=1 // pred_region
      _
    $region5: #{mlp_forward.1} parent=1 // pred_fallthru
      _
    // Predicated region
    $region6: #{mlp_forward.1} parent=1 // pred_check
      _
    $region7: #{mlp_forward.1} parent=1 // pred_check_branch
      %18 = sbr.rel (0) target = $region9
    $region8: #{mlp_forward.1} parent=1 // pred_region
      _
    $region9: #{mlp_forward.1} parent=1 // pred_fallthru
      _
    // Predicated region
    $region10: #{mlp_forward.1} parent=1 // pred_check
      _
    $region11: #{mlp_forward.1} parent=1 // pred_check_branch
      %20 = sbr.rel (0) target = $region13
    $region12: #{mlp_forward.1} parent=1 // pred_region
      _
    $region13: #{mlp_forward.1} parent=1 // pred_fallthru
      _
    // Predicated region
    $region14: #{mlp_forward.1} parent=1 // pred_check
      _
    $region15: #{mlp_forward.1} parent=1 // pred_check_branch
      %22 = sbr.rel (0) target = $region17
    $region16: #{mlp_forward.1} parent=1 // pred_region
      _
    $region17: #{mlp_forward.1} parent=1 // pred_fallthru
      _
    // Predicated region
    $region18: #{mlp_forward.1} parent=1 // pred_check
      _
    $region19: #{mlp_forward.1} parent=1 // pred_check_branch
      %24 = sbr.rel (0) target = $region21
    $region20: #{mlp_forward.1} parent=1 // pred_region
      _
    $region21: #{mlp_forward.1} parent=1 // pred_fallthru
      _
    // Predicated region
    $region22: #{mlp_forward.1} parent=1 // pred_check
      _
    $region23: #{mlp_forward.1} parent=1 // pred_check_branch
      %26 = sbr.rel (0) target = $region25
    $region24: #{mlp_forward.1} parent=1 // pred_region
      _
    $region25: #{mlp_forward.1} parent=1 // pred_fallthru
      _
    // Predicated region
    $region26: #{mlp_forward.1} parent=1 // pred_check
      _
    $region27: #{mlp_forward.1} parent=1 // pred_check_branch
      %28 = sbr.rel (0) target = $region29
    $region28: #{mlp_forward.1} parent=1 // pred_region
      _
    $region29: #{mlp_forward.1} parent=1 // pred_fallthru
      _
    // Predicated region
    $region30: #{mlp_forward.1} parent=1 // pred_check
      _
    $region31: #{mlp_forward.1} parent=1 // pred_check_branch
      %30 = sbr.rel (0) target = $region33
    $region32: #{mlp_forward.1} parent=1 // pred_region
      _
    $region33: #{mlp_forward.1} parent=1 // pred_fallthru
      _
    // Predicated region
    $region34: #{mlp_forward.1} parent=1 // pred_check
      _
    $region35: #{mlp_forward.1} parent=1 // pred_check_branch
      %32 = sbr.rel (0) target = $region37
    $region36: #{mlp_forward.1} parent=1 // pred_region
      _
    $region37: #{mlp_forward.1} parent=1 // pred_fallthru
      _
    %v33 = vld [vmem:[%s0] sm:$0xff]
    %v34 = vld [vmem:[%s0 + $0x8] sm:$0x1f]
    %v35 = vld [vmem:[%s1] sm:$0xff]
    %v36 = vld [vmem:[%s2] sm:$0xff]
    %38 = vset.pattern.permute.xlu0 0
    %39 = vperm.xlu0 %38, %v36
    %v40 = vpop.permute.xlu0 %39
    %vm42 = vcmask 105472
    %v44 = vsel %vm42, %v35, 0
    %vm46 = vcmask 1044480
    %v48 = vsel %vm46, %v34, 0
    %50 = vmatprep.subr.mxu0 0.0
    %51 = vmatpush1.msra.mxu0 %v33
    %52 = vmatprep.subr.mxu0 0.0
    %53 = vmatpush1.msra.mxu0 %v48
    %54 = vmatprep.subr.mxu0 0.0
    %55 = vmatpush1.msra.mxu0 0.0
    %56 = vmatprep.subr.mxu0 0.0
    %57 = vmatpush1.msra.mxu0 0.0
    %58 = vmatprep.subr.mxu0 0.0
    %59 = vmatpush1.msra.mxu0 0.0
    %60 = vmatprep.subr.mxu0 0.0
    %61 = vmatpush1.msra.mxu0 0.0
    %62 = vmatprep.subr.mxu0 0.0
    %63 = vmatpush1.msra.mxu0 0.0
    %64 = vmatprep.subr.mxu0 0.0
    %65 = vmatpush1.msra.mxu0 0.0
    %66 = vmatprep.subr.mxu0 0.0
    %67 = vmatpush1.msra.mxu0 0.0
    %68 = vmatprep.subr.mxu0 0.0
    %69 = vmatpush1.msra.mxu0 0.0
    %70 = vmatprep.subr.mxu0 0.0
    %71 = vmatpush1.msra.mxu0 0.0
    %72 = vmatprep.subr.mxu0 0.0
    %73 = vmatpush1.msra.mxu0 0.0
    %74 = vmatprep.subr.mxu0 0.0
    %75 = vmatpush1.msra.mxu0 0.0
    %76 = vmatprep.subr.mxu0 0.0
    %77 = vmatpush1.msra.mxu0 0.0
    %78 = vmatprep.subr.mxu0 0.0
    %79 = vmatpush1.msra.mxu0 0.0
    %80 = vmatprep.subr.mxu0 0.0
    %81 = vmatpush1.msra.mxu0 0.0
    %82 = vmatprep.subr.mxu0 0.0
    %83 = vmatpush1.msra.mxu0 0.0
    %84 = vmatprep.subr.mxu0 0.0
    %85 = vmatpush1.msra.mxu0 0.0
    %86 = vmatprep.subr.mxu0 0.0
    %87 = vmatpush1.msra.mxu0 0.0
    %88 = vmatprep.subr.mxu0 0.0
    %89 = vmatpush1.msra.mxu0 0.0
    %90 = vmatprep.subr.mxu0 0.0
    %91 = vmatpush1.msra.mxu0 0.0
    %92 = vmatprep.subr.mxu0 0.0
    %93 = vmatpush1.msra.mxu0 0.0
    %94 = vmatprep.subr.mxu0 0.0
    %95 = vmatpush1.msra.mxu0 0.0
    %96 = vmatprep.subr.mxu0 0.0
    %97 = vmatpush1.msra.mxu0 0.0
    %98 = vmatprep.subr.mxu0 0.0
    %99 = vmatpush1.msra.mxu0 0.0
    %100 = vmatprep.subr.mxu0 0.0
    %101 = vmatpush1.msra.mxu0 0.0
    %102 = vmatprep.subr.mxu0 0.0
    %103 = vmatpush1.msra.mxu0 0.0
    %104 = vmatprep.subr.mxu0 0.0
    %105 = vmatpush1.msra.mxu0 0.0
    %106 = vmatprep.subr.mxu0 0.0
    %107 = vmatpush1.msra.mxu0 0.0
    %108 = vmatprep.subr.mxu0 0.0
    %109 = vmatpush1.msra.mxu0 0.0
    %110 = vmatprep.subr.mxu0 0.0
    %111 = vmatpush1.msra.mxu0 0.0
    %112 = vmatprep.subr.mxu0 0.0
    %113 = vmatpush1.msra.mxu0 0.0
    %114 = vmatprep.mubr.f32.mxu0 0.0
    %115 = vmatmul.mubr.f32.gmra.mrb[0].mxu0 %v44
    %v116 = vpop.f32.mrb[0].mxu0
    %v117 = vadd.f32 %v40, %v116
    %v118 = vpop.f32.mrb[0].mxu0
    %119 = vdwg.mxu0
    %v120 = vmul.f32 %v117, 0.5
    %v121 = vtanh.pop %v120
    %v122 = vmul.f32 %v121, 0.5
    %v123 = vadd.f32 %v122, 0.5
    %v124 = vld [vmem:[%s3] sm:$0xff]
    %v125 = vld [vmem:[%s4] sm:$0xff]
    %127 = vset.pattern.permute.xlu0 0
    %128 = vperm.xlu0 %127, %v125
    %v129 = vpop.permute.xlu0 %128
    %vm131 = vcmask 64512
    %v133 = vsel %vm131, %v124, 0
    %135 = vmatprep.subr.mxu0 0.0
    %136 = vmatpush1.msra.mxu0 %v123
    %137 = vmatprep.subr.mxu0 0.0
    %138 = vmatpush1.msra.mxu0 0.0
    %139 = vmatprep.subr.mxu0 0.0
    %140 = vmatpush1.msra.mxu0 0.0
    %141 = vmatprep.subr.mxu0 0.0
    %142 = vmatpush1.msra.mxu0 0.0
    %143 = vmatprep.subr.mxu0 0.0
    %144 = vmatpush1.msra.mxu0 0.0
    %145 = vmatprep.subr.mxu0 0.0
    %146 = vmatpush1.msra.mxu0 0.0
    %147 = vmatprep.subr.mxu0 0.0
    %148 = vmatpush1.msra.mxu0 0.0
    %149 = vmatprep.subr.mxu0 0.0
    %150 = vmatpush1.msra.mxu0 0.0
    %151 = vmatprep.subr.mxu0 0.0
    %152 = vmatpush1.msra.mxu0 0.0
    %153 = vmatprep.subr.mxu0 0.0
    %154 = vmatpush1.msra.mxu0 0.0
    %155 = vmatprep.subr.mxu0 0.0
    %156 = vmatpush1.msra.mxu0 0.0
    %157 = vmatprep.subr.mxu0 0.0
    %158 = vmatpush1.msra.mxu0 0.0
    %159 = vmatprep.subr.mxu0 0.0
    %160 = vmatpush1.msra.mxu0 0.0
    %161 = vmatprep.subr.mxu0 0.0
    %162 = vmatpush1.msra.mxu0 0.0
    %163 = vmatprep.subr.mxu0 0.0
    %164 = vmatpush1.msra.mxu0 0.0
    %165 = vmatprep.subr.mxu0 0.0
    %166 = vmatpush1.msra.mxu0 0.0
    %167 = vmatprep.subr.mxu0 0.0
    %168 = vmatpush1.msra.mxu0 0.0
    %169 = vmatprep.subr.mxu0 0.0
    %170 = vmatpush1.msra.mxu0 0.0
    %171 = vmatprep.subr.mxu0 0.0
    %172 = vmatpush1.msra.mxu0 0.0
    %173 = vmatprep.subr.mxu0 0.0
    %174 = vmatpush1.msra.mxu0 0.0
    %175 = vmatprep.subr.mxu0 0.0
    %176 = vmatpush1.msra.mxu0 0.0
    %177 = vmatprep.subr.mxu0 0.0
    %178 = vmatpush1.msra.mxu0 0.0
    %179 = vmatprep.subr.mxu0 0.0
    %180 = vmatpush1.msra.mxu0 0.0
    %181 = vmatprep.subr.mxu0 0.0
    %182 = vmatpush1.msra.mxu0 0.0
    %183 = vmatprep.subr.mxu0 0.0
    %184 = vmatpush1.msra.mxu0 0.0
    %185 = vmatprep.subr.mxu0 0.0
    %186 = vmatpush1.msra.mxu0 0.0
    %187 = vmatprep.subr.mxu0 0.0
    %188 = vmatpush1.msra.mxu0 0.0
    %189 = vmatprep.subr.mxu0 0.0
    %190 = vmatpush1.msra.mxu0 0.0
    %191 = vmatprep.subr.mxu0 0.0
    %192 = vmatpush1.msra.mxu0 0.0
    %193 = vmatprep.subr.mxu0 0.0
    %194 = vmatpush1.msra.mxu0 0.0
    %195 = vmatprep.subr.mxu0 0.0
    %196 = vmatpush1.msra.mxu0 0.0
    %197 = vmatprep.subr.mxu0 0.0
    %198 = vmatpush1.msra.mxu0 0.0
    %199 = vmatprep.mubr.f32.mxu0 0.0
    %200 = vmatmul.mubr.f32.gmra.mrb[0].mxu0 %v133
    %v201 = vpop.f32.mrb[0].mxu0
    %v202 = vadd.f32 %v129, %v201
    %v203 = vpop.f32.mrb[0].mxu0
    %204 = vdwg.mxu0
    %v205 = vmul.f32 %v202, 0.5
    %v206 = vtanh.pop %v205
    %v207 = vmul.f32 %v206, 0.5
    %v208 = vadd.f32 %v207, 0.5
    %v209 = vld [vmem:[%s5] sm:$0xff]
    %v210 = vld [vmem:[%s6] sm:$0xff]
    %212 = vset.pattern.permute.xlu0 0
    %213 = vperm.xlu0 %212, %v210
    %v214 = vpop.permute.xlu0 %213
    %v217 = vsel %vm131, %v209, 0
    %219 = vmatprep.subr.mxu0 0.0
    %220 = vmatpush1.msra.mxu0 %v208
    %221 = vmatprep.subr.mxu0 0.0
    %222 = vmatpush1.msra.mxu0 0.0
    %223 = vmatprep.subr.mxu0 0.0
    %224 = vmatpush1.msra.mxu0 0.0
    %225 = vmatprep.subr.mxu0 0.0
    %226 = vmatpush1.msra.mxu0 0.0
    %227 = vmatprep.subr.mxu0 0.0
    %228 = vmatpush1.msra.mxu0 0.0
    %229 = vmatprep.subr.mxu0 0.0
    %230 = vmatpush1.msra.mxu0 0.0
    %231 = vmatprep.subr.mxu0 0.0
    %232 = vmatpush1.msra.mxu0 0.0
    %233 = vmatprep.subr.mxu0 0.0
    %234 = vmatpush1.msra.mxu0 0.0
    %235 = vmatprep.subr.mxu0 0.0
    %236 = vmatpush1.msra.mxu0 0.0
    %237 = vmatprep.subr.mxu0 0.0
    %238 = vmatpush1.msra.mxu0 0.0
    %239 = vmatprep.subr.mxu0 0.0
    %240 = vmatpush1.msra.mxu0 0.0
    %241 = vmatprep.subr.mxu0 0.0
    %242 = vmatpush1.msra.mxu0 0.0
    %243 = vmatprep.subr.mxu0 0.0
    %244 = vmatpush1.msra.mxu0 0.0
    %245 = vmatprep.subr.mxu0 0.0
    %246 = vmatpush1.msra.mxu0 0.0
    %247 = vmatprep.subr.mxu0 0.0
    %248 = vmatpush1.msra.mxu0 0.0
    %249 = vmatprep.subr.mxu0 0.0
    %250 = vmatpush1.msra.mxu0 0.0
    %251 = vmatprep.subr.mxu0 0.0
    %252 = vmatpush1.msra.mxu0 0.0
    %253 = vmatprep.subr.mxu0 0.0
    %254 = vmatpush1.msra.mxu0 0.0
    %255 = vmatprep.subr.mxu0 0.0
    %256 = vmatpush1.msra.mxu0 0.0
    %257 = vmatprep.subr.mxu0 0.0
    %258 = vmatpush1.msra.mxu0 0.0
    %259 = vmatprep.subr.mxu0 0.0
    %260 = vmatpush1.msra.mxu0 0.0
    %261 = vmatprep.subr.mxu0 0.0
    %262 = vmatpush1.msra.mxu0 0.0
    %263 = vmatprep.subr.mxu0 0.0
    %264 = vmatpush1.msra.mxu0 0.0
    %265 = vmatprep.subr.mxu0 0.0
    %266 = vmatpush1.msra.mxu0 0.0
    %267 = vmatprep.subr.mxu0 0.0
    %268 = vmatpush1.msra.mxu0 0.0
    %269 = vmatprep.subr.mxu0 0.0
    %270 = vmatpush1.msra.mxu0 0.0
    %271 = vmatprep.subr.mxu0 0.0
    %272 = vmatpush1.msra.mxu0 0.0
    %273 = vmatprep.subr.mxu0 0.0
    %274 = vmatpush1.msra.mxu0 0.0
    %275 = vmatprep.subr.mxu0 0.0
    %276 = vmatpush1.msra.mxu0 0.0
    %277 = vmatprep.subr.mxu0 0.0
    %278 = vmatpush1.msra.mxu0 0.0
    %279 = vmatprep.subr.mxu0 0.0
    %280 = vmatpush1.msra.mxu0 0.0
    %281 = vmatprep.subr.mxu0 0.0
    %282 = vmatpush1.msra.mxu0 0.0
    %283 = vmatprep.mubr.f32.mxu0 0.0
    %284 = vmatmul.mubr.f32.gmra.mrb[0].mxu0 %v217
    %v285 = vpop.f32.mrb[0].mxu0
    %v286 = vadd.f32 %v214, %v285
    %v287 = vpop.f32.mrb[0].mxu0
    %288 = vdwg.mxu0
    %v289 = vmul.f32 %v286, 0.5
    %v290 = vtanh.pop %v289
    %v291 = vmul.f32 %v290, 0.5
    %v292 = vadd.f32 %v291, 0.5
    %v293 = vld [vmem:[%s7] sm:$0xff]
    %v294 = vld [vmem:[%s8] sm:$0xff]
    %296 = vset.pattern.permute.xlu0 0
    %297 = vperm.xlu0 %296, %v294
    %v298 = vpop.permute.xlu0 %297
    %v301 = vsel %vm131, %v293, 0
    %303 = vmatprep.subr.mxu0 0.0
    %304 = vmatpush1.msra.mxu0 %v292
    %305 = vmatprep.subr.mxu0 0.0
    %306 = vmatpush1.msra.mxu0 0.0
    %307 = vmatprep.subr.mxu0 0.0
    %308 = vmatpush1.msra.mxu0 0.0
    %309 = vmatprep.subr.mxu0 0.0
    %310 = vmatpush1.msra.mxu0 0.0
    %311 = vmatprep.subr.mxu0 0.0
    %312 = vmatpush1.msra.mxu0 0.0
    %313 = vmatprep.subr.mxu0 0.0
    %314 = vmatpush1.msra.mxu0 0.0
    %315 = vmatprep.subr.mxu0 0.0
    %316 = vmatpush1.msra.mxu0 0.0
    %317 = vmatprep.subr.mxu0 0.0
    %318 = vmatpush1.msra.mxu0 0.0
    %319 = vmatprep.subr.mxu0 0.0
    %320 = vmatpush1.msra.mxu0 0.0
    %321 = vmatprep.subr.mxu0 0.0
    %322 = vmatpush1.msra.mxu0 0.0
    %323 = vmatprep.subr.mxu0 0.0
    %324 = vmatpush1.msra.mxu0 0.0
    %325 = vmatprep.subr.mxu0 0.0
    %326 = vmatpush1.msra.mxu0 0.0
    %327 = vmatprep.subr.mxu0 0.0
    %328 = vmatpush1.msra.mxu0 0.0
    %329 = vmatprep.subr.mxu0 0.0
    %330 = vmatpush1.msra.mxu0 0.0
    %331 = vmatprep.subr.mxu0 0.0
    %332 = vmatpush1.msra.mxu0 0.0
    %333 = vmatprep.subr.mxu0 0.0
    %334 = vmatpush1.msra.mxu0 0.0
    %335 = vmatprep.subr.mxu0 0.0
    %336 = vmatpush1.msra.mxu0 0.0
    %337 = vmatprep.subr.mxu0 0.0
    %338 = vmatpush1.msra.mxu0 0.0
    %339 = vmatprep.subr.mxu0 0.0
    %340 = vmatpush1.msra.mxu0 0.0
    %341 = vmatprep.subr.mxu0 0.0
    %342 = vmatpush1.msra.mxu0 0.0
    %343 = vmatprep.subr.mxu0 0.0
    %344 = vmatpush1.msra.mxu0 0.0
    %345 = vmatprep.subr.mxu0 0.0
    %346 = vmatpush1.msra.mxu0 0.0
    %347 = vmatprep.subr.mxu0 0.0
    %348 = vmatpush1.msra.mxu0 0.0
    %349 = vmatprep.subr.mxu0 0.0
    %350 = vmatpush1.msra.mxu0 0.0
    %351 = vmatprep.subr.mxu0 0.0
    %352 = vmatpush1.msra.mxu0 0.0
    %353 = vmatprep.subr.mxu0 0.0
    %354 = vmatpush1.msra.mxu0 0.0
    %355 = vmatprep.subr.mxu0 0.0
    %356 = vmatpush1.msra.mxu0 0.0
    %357 = vmatprep.subr.mxu0 0.0
    %358 = vmatpush1.msra.mxu0 0.0
    %359 = vmatprep.subr.mxu0 0.0
    %360 = vmatpush1.msra.mxu0 0.0
    %361 = vmatprep.subr.mxu0 0.0
    %362 = vmatpush1.msra.mxu0 0.0
    %363 = vmatprep.subr.mxu0 0.0
    %364 = vmatpush1.msra.mxu0 0.0
    %365 = vmatprep.subr.mxu0 0.0
    %366 = vmatpush1.msra.mxu0 0.0
    %367 = vmatprep.mubr.f32.mxu0 0.0
    %368 = vmatmul.mubr.f32.gmra.mrb[0].mxu0 %v301
    %v369 = vpop.f32.mrb[0].mxu0
    %v370 = vadd.f32 %v298, %v369
    %v371 = vpop.f32.mrb[0].mxu0
    %372 = vdwg.mxu0
    %v373 = vmul.f32 %v370, 0.5
    %v374 = vtanh.pop %v373
    %v375 = vmul.f32 %v374, 0.5
    %v376 = vadd.f32 %v375, 0.5
    %377 = vst [vmem:[#allocation2] sm:$0x1] %v376
    // Predicated region
    $region38: #{mlp_forward.1} parent=1 // pred_check
      _
    $region39: #{mlp_forward.1} parent=1 // pred_check_branch
      %379 = sbr.rel (0) target = $region41
    $region40: #{mlp_forward.1} parent=1 // pred_region
      %s381 = ssub.s32 16, 16
      %382 = vsyncadd [#allocation3], %s381
      %s384 = sshll.u32 [#allocation2], 4
      %s385 = int_to_ptr.vmem [resolvable:$true] %s384
      %387 = dma.vmem_to_hbm [thread:$0]  %s385, 16, %s9, [#allocation3]
    $region41: #{mlp_forward.1} parent=1 // pred_fallthru
      _
    // Predicated region
    $region42: #{mlp_forward.1} parent=1 // pred_check
      _
    $region43: #{mlp_forward.1} parent=1 // pred_check_branch
      %389 = sbr.rel (0) target = $region45
    $region44: #{mlp_forward.1} parent=1 // pred_region
      %390 = dma.done [#allocation3], 16
    $region45: #{mlp_forward.1} parent=1 // pred_fallthru
      _
    %391 = vsyncpa [#allocation3], 1

</llo_original>
